<compile_context>
chip_gen: v6e
topology: v6e:2x2x1
jax: 0.10.0
libtpu: 0.0.40
codegen_flags: <defaults>
</compile_context>

<pallas_src>
import math

import jax
import jax.numpy as jnp
from jax import lax
from jax.experimental import pallas as pl
from jax.experimental.pallas import tpu as pltpu

# ----------------------------------------------------------------------------
# Synthetic model configuration (the real config lives inside the .pt checkpoint
# which we do not load; node_feat_dim matches the real 128, the rest is scaled).
# ----------------------------------------------------------------------------
CFG = dict(
    D=128,         # node_feat_dim (real config value -> lane-dense)
    Z=16,          # pair_feat_dim (scaled down)
    H=4,           # num_heads
    C=8,           # query_key_dim
    V=8,           # value_dim
    P=4,           # num_query_points
    PV=4,          # num_value_points
    layers=2,      # geomattn.num_layers
    max_relpos=8,
)
ATOM_N, ATOM_CA, ATOM_C = 0, 1, 2


def _vmem_specs(n):
    return [pl.BlockSpec(memory_space=pltpu.MemorySpace.VMEM) for _ in range(n)]


# ----------------------------------------------------------------------------
# Geometry glue (plain JAX; tiny elementwise work).
# ----------------------------------------------------------------------------
def normalize_vector(v, eps=1e-6):
    return v / (jnp.linalg.norm(v, axis=-1, keepdims=True) + eps)


def construct_3d_basis(center, p1, p2):
    """center=CA, p1=C, p2=N -> (N, L, 3, 3) basis with columns [e1, e2, e3]."""
    v1 = p1 - center
    e1 = normalize_vector(v1)
    v2 = p2 - center
    u2 = v2 - (e1 * v2).sum(-1, keepdims=True) * e1
    e2 = normalize_vector(u2)
    e3 = jnp.cross(e1, e2)
    return jnp.stack([e1, e2, e3], axis=-1)


def global_to_local(R, t, q):
    """q: (N, L, ..., 3) global -> local coords via R^T (q - t)."""
    qs = q.shape
    qf = q.reshape(qs[0], qs[1], -1, 3)
    p = jnp.einsum("nlji,nlkj->nlki", R, qf - t[:, :, None, :])
    return p.reshape(qs)


# ----------------------------------------------------------------------------
# Pallas kernel: PerResidueEncoder MLP (Linear/ReLU x3 + Linear), grid=().
# TODO(synk): exploit the one-hot block sparsity of the coord features (gather
#             the (42, 2D) w1 block per residue via scalar-prefetched aa) at
#             real L / real hidden sizes.
# ----------------------------------------------------------------------------
def residue_mlp_kernel(feat_ref, w1, b1, w2, b2, w3, b3, w4, b4, out_ref):
    h = feat_ref[...]
    h = jnp.maximum(jnp.dot(h, w1[...], preferred_element_type=jnp.float32) + b1[...], 0.0)
    h = jnp.maximum(jnp.dot(h, w2[...], preferred_element_type=jnp.float32) + b2[...], 0.0)
    h = jnp.maximum(jnp.dot(h, w3[...], preferred_element_type=jnp.float32) + b3[...], 0.0)
    out_ref[...] = jnp.dot(h, w4[...], preferred_element_type=jnp.float32) + b4[...]


def residue_mlp_call(feat, p):
    L = feat.shape[0]
    D = CFG["D"]
    args = (feat, p["w1"], p["b1"], p["w2"], p["b2"], p["w3"], p["b3"], p["w4"], p["b4"])
    return pl.pallas_call(
        residue_mlp_kernel,
        out_shape=jax.ShapeDtypeStruct((L, D), jnp.float32),
        in_specs=_vmem_specs(len(args)),
        out_specs=pl.BlockSpec(memory_space=pltpu.MemorySpace.VMEM),
    )(*args)


# ----------------------------------------------------------------------------
# Pallas kernel: the WHOLE GAEncoder (all GABlocks) in one pallas_call.
# grid=(layers,), x carried across layers in a VMEM scratch; per-layer weights
# are streamed via BlockSpec index maps over the leading (layer) axis.
# ----------------------------------------------------------------------------
def make_ga_encoder_kernel(L, D, Z, H, C, V, P, PV, n_layers):
    HC, HV = H * C, H * V
    HP, HPV = H * P, H * PV
    # w_proj column layout: [q | k | v | q_pts | k_pts | v_pts],
    # point blocks ordered (local_coord, head, point).
    Q_OFF, K_OFF, V_OFF = 0, HC, 2 * HC
    QP_OFF = 2 * HC + HV
    KP_OFF = QP_OFF + 3 * HP
    VP_OFF = KP_OFF + 3 * HP
    # wo row layout: [p2n | node | points | distance | direction],
    # points/direction rows ordered (head, coord, point) (permuted at prep time).
    OFF_P2N = 0
    OFF_NODE = H * Z
    OFF_PTS = OFF_NODE + HV
    OFF_DIST = OFF_PTS + 3 * HPV
    OFF_DIR = OFF_DIST + HPV

    qk_scale = 1.0 / math.sqrt(C)
    inv_sqrt3 = math.sqrt(1.0 / 3.0)
    nt = (((1,), (1,)), ((), ()))   # contract last dims (A @ B.T) w/o XLU transpose

    def kernel(x0_ref, z_ref, r_ref, t_ref, mrow_ref, mcol_ref,
               scal_ref, wproj_ref, wpbT_ref, wo_ref, wt_ref, vecs_ref,
               out_ref, x_state):
        layer = pl.program_id(0)

        @pl.when(layer == 0)
        def _():
            x_state[...] = x0_ref[...]

        x = x_state[...]                       # (L, D)
        z = z_ref[...]                         # (L, L, Z)
        R = r_ref[...]                         # (L, 9) row-major R[l, 3*row + col]
        t = t_ref[...]                         # (L, 3)
        mrow = mrow_ref[...]                   # (L, 1)
        mcol = mcol_ref[...]                   # (1, L)
        mask_pair = mrow * mcol                # (L, L)

        wproj = wproj_ref[0]                   # (D, PROJ)
        wpbT = wpbT_ref[0]                     # (Z, H)
        wo = wo_ref[0]                         # (F_IN, D)
        wt = wt_ref[0]                         # (3*D, D)
        vecs = vecs_ref[0]                     # (8, D): bo, ln1g, ln1b, bt1, bt2, bt3, ln2g, ln2b
        bo = vecs[0:1]
        ln1g, ln1b = vecs[1:2], vecs[2:3]
        bt1, bt2, bt3 = vecs[3:4], vecs[4:5], vecs[5:6]
        ln2g, ln2b = vecs[6:7], vecs[7:8]

        # --- all node + point projections with ONE MXU matmul
        proj = jnp.dot(x, wproj, preferred_element_type=jnp.float32)   # (L, PROJ)

        # --- pair-bias logits for all heads with one matmul
        pb3 = jnp.dot(z.reshape(L * L, Z), wpbT,
                      preferred_element_type=jnp.float32).reshape(L, L, H)

        # --- point coords (all heads at once), transform local -> global frame
        lq = [proj[:, QP_OFF + k * HP: QP_OFF + (k + 1) * HP] for k in range(3)]
        lk = [proj[:, KP_OFF + k * HP: KP_OFF + (k + 1) * HP] for k in range(3)]
        lv = [proj[:, VP_OFF + k * HPV: VP_OFF + (k + 1) * HPV] for k in range(3)]
        gq, gk, gv = [], [], []
        for c in range(3):
            r0 = R[:, 3 * c + 0: 3 * c + 1]
            r1 = R[:, 3 * c + 1: 3 * c + 2]
            r2 = R[:, 3 * c + 2: 3 * c + 3]
            tc = t[:, c:c + 1]
            gq.append(r0 * lq[0] + r1 * lq[1] + r2 * lq[2] + tc)   # (L, H*P)
            gk.append(r0 * lk[0] + r1 * lk[1] + r2 * lk[2] + tc)
            gv.append(r0 * lv[0] + r1 * lv[1] + r2 * lv[2] + tc)   # (L, H*PV)

        fa = jnp.zeros((L, D), jnp.float32)    # out_transform accumulator

        for h in range(H):
            q_h = proj[:, Q_OFF + h * C: Q_OFF + (h + 1) * C]
            k_h = proj[:, K_OFF + h * C: K_OFF + (h + 1) * C]
            v_h = proj[:, V_OFF + h * V: V_OFF + (h + 1) * V]

            logits_node = lax.dot_general(
                q_h, k_h, nt, preferred_element_type=jnp.float32) * qk_scale
            logits_pair = jnp.sum(pb3[:, :, h:h + 1], axis=-1) + scal_ref[layer, H + h]

            gq_h = [gq[c][:, h * P:(h + 1) * P] for c in range(3)]
            gk_h = [gk[c][:, h * P:(h + 1) * P] for c in range(3)]
            gv_h = [gv[c][:, h * PV:(h + 1) * PV] for c in range(3)]

            # ||q - k||^2 = ||q||^2 + ||k||^2 - 2 q.k  (cross term on the MXU)
            cross = (lax.dot_general(gq_h[0], gk_h[0], nt, preferred_element_type=jnp.float32)
                     + lax.dot_general(gq_h[1], gk_h[1], nt, preferred_element_type=jnp.float32)
                     + lax.dot_general(gq_h[2], gk_h[2], nt, preferred_element_type=jnp.float32))
            qsq = sum(jnp.sum(gq_h[c] * gq_h[c], axis=-1, keepdims=True) for c in range(3))
            ksq = sum(jnp.sum(gk_h[c] * gk_h[c], axis=-1, keepdims=True) for c in range(3))
            d2 = qsq + jnp.transpose(ksq) - 2.0 * cross
            logits_spatial = d2 * scal_ref[layer, h]   # scal = -softplus(gamma)*sqrt(2/(9P))/2

            logits = (logits_node + logits_pair + logits_spatial) * inv_sqrt3
            # reference masking (_alpha_from_logits): masked pairs get logits - 1e5
            logits = jnp.where(mask_pair > 0.5, logits, logits - 1e5)
            m = jnp.max(logits, axis=-1, keepdims=True)
            e = jnp.exp(logits - m)
            alpha = e * pl.reciprocal(jnp.sum(e, axis=-1, keepdims=True), approx=True)
            alpha = alpha * mrow                         # zero masked query rows

            # --- pair->node aggregation (batched contraction; z read once)
            p2n = jnp.einsum('qik,qkz->qiz', alpha[:, None, :], z,
                             preferred_element_type=jnp.float32)[:, 0, :]     # (L, Z)
            fa = fa + jnp.dot(p2n, wo[OFF_P2N + h * Z: OFF_P2N + (h + 1) * Z],
                              preferred_element_type=jnp.float32)

            # --- node-feature aggregation
            node = jnp.dot(alpha, v_h, preferred_element_type=jnp.float32)    # (L, V)
            fa = fa + jnp.dot(node, wo[OFF_NODE + h * V: OFF_NODE + (h + 1) * V],
                              preferred_element_type=jnp.float32)

            # --- spatial aggregation (global -> local), accumulated straight into fa
            aggr = [jnp.dot(alpha, gv_h[c], preferred_element_type=jnp.float32)
                    for c in range(3)]                                        # (L, PV)
            lp = []
            for c in range(3):
                acc = (R[:, 0 + c: 0 + c + 1] * (aggr[0] - t[:, 0:1])
                       + R[:, 3 + c: 3 + c + 1] * (aggr[1] - t[:, 1:2])
                       + R[:, 6 + c: 6 + c + 1] * (aggr[2] - t[:, 2:3]))
                lp.append(acc)                                                # (L, PV)
            dist = jnp.sqrt(lp[0] * lp[0] + lp[1] * lp[1] + lp[2] * lp[2])
            inv_dist = pl.reciprocal(dist + 1e-4, approx=True)
            for c in range(3):
                base = OFF_PTS + (h * 3 + c) * PV
                fa = fa + jnp.dot(lp[c], wo[base: base + PV],
                                  preferred_element_type=jnp.float32)
                base = OFF_DIR + (h * 3 + c) * PV
                fa = fa + jnp.dot(lp[c] * inv_dist, wo[base: base + PV],
                                  preferred_element_type=jnp.float32)
            fa = fa + jnp.dot(dist, wo[OFF_DIST + h * PV: OFF_DIST + (h + 1) * PV],
                              preferred_element_type=jnp.float32)

        # out_transform bias + mask_zero, residual + LayerNorm 1
        fa = (fa + bo) * mrow
        x1 = x + fa
        mu = jnp.mean(x1, axis=-1, keepdims=True)
        var = jnp.mean((x1 - mu) * (x1 - mu), axis=-1, keepdims=True)
        x1 = (x1 - mu) * lax.rsqrt(var + 1e-5) * ln1g + ln1b

        # transition MLP, residual + LayerNorm 2
        h1 = jnp.maximum(jnp.dot(x1, wt[0:D], preferred_element_type=jnp.float32) + bt1, 0.0)
        h2 = jnp.maximum(jnp.dot(h1, wt[D:2 * D], preferred_element_type=jnp.float32) + bt2, 0.0)
        h3 = jnp.dot(h2, wt[2 * D:3 * D], preferred_element_type=jnp.float32) + bt3
        x2 = x1 + h3
        mu2 = jnp.mean(x2, axis=-1, keepdims=True)
        var2 = jnp.mean((x2 - mu2) * (x2 - mu2), axis=-1, keepdims=True)
        x_new = (x2 - mu2) * lax.rsqrt(var2 + 1e-5) * ln2g + ln2b

        x_state[...] = x_new

        @pl.when(layer == n_layers - 1)
        def _():
            out_ref[...] = x_new

    return kernel


def ga_encoder_call(x0, z, R9, t, mrow, mcol, g):
    L, D = x0.shape
    Z = z.shape[-1]
    H, C, V, P, PV = (CFG[k] for k in ("H", "C", "V", "P", "PV"))
    n_layers = g["wproj"].shape[0]
    kernel = make_ga_encoder_kernel(L, D, Z, H, C, V, P, PV, n_layers)

    def const_spec(shape):
        zeros = (0,) * len(shape)
        return pl.BlockSpec(tuple(shape), lambda l, _z=zeros: _z)

    def layer_spec(shape):
        nd = len(shape)
        return pl.BlockSpec((1,) + tuple(shape[1:]),
                            lambda l, _n=nd: (l,) + (0,) * (_n - 1))

    in_specs = [
        const_spec(x0.shape), const_spec(z.shape), const_spec(R9.shape),
        const_spec(t.shape), const_spec(mrow.shape), const_spec(mcol.shape),
        pl.BlockSpec(memory_space=pltpu.MemorySpace.SMEM),   # gamma*scale | pair-bias bias
        layer_spec(g["wproj"].shape),
        layer_spec(g["wpbT"].shape),
        layer_spec(g["wo"].shape),
        layer_spec(g["wt"].shape),
        layer_spec(g["vecs"].shape),
    ]
    return pl.pallas_call(
        kernel,
        grid=(n_layers,),
        in_specs=in_specs,
        out_specs=pl.BlockSpec((L, D), lambda l: (0, 0)),
        out_shape=jax.ShapeDtypeStruct((L, D), jnp.float32),
        scratch_shapes=[pltpu.VMEM((L, D), jnp.float32)],
        compiler_params=pltpu.CompilerParams(dimension_semantics=("arbitrary",)),
    )(x0, z, R9, t, mrow, mcol,
      g["scal"], g["wproj"], g["wpbT"], g["wo"], g["wt"], g["vecs"])


# ----------------------------------------------------------------------------
# Full DDGBackbone.forward equivalent.
# ----------------------------------------------------------------------------
def ddg_backbone_forward(x_nodes, params):
    L = x_nodes.shape[0]
    max_relpos = CFG["max_relpos"]

    # --- DDGBackbone.forward slicing of node features
    pos14 = x_nodes[:, :42].reshape(1, L, 14, 3)
    aa = x_nodes[:, 42].reshape(1, L).astype(jnp.int32)
    seq = x_nodes[:, 43].reshape(1, L).astype(jnp.int32)
    chain = x_nodes[:, 44].reshape(1, L).astype(jnp.int32)
    mask_atom = x_nodes[:, 45:59].reshape(1, L, 14) > 0.5

    # --- pair features (relative sequence position embedding)
    same_chain = chain[:, None, :] == chain[:, :, None]
    relpos = jnp.clip(seq[:, None, :] - seq[:, :, None], -max_relpos, max_relpos) + max_relpos
    relpos = jnp.where(same_chain, relpos, jnp.full_like(relpos, 2 * max_relpos + 1))
    pair_feat = params["relpos_emb"][relpos]                       # (1, L, L, Z)

    # --- residue frames + local coordinates
    R = construct_3d_basis(pos14[:, :, ATOM_CA], pos14[:, :, ATOM_C], pos14[:, :, ATOM_N])
    t = pos14[:, :, ATOM_CA]
    crd14 = global_to_local(R, t, pos14)                           # (1, L, 14, 3)
    crd14 = jnp.where(mask_atom[..., None], crd14, 0.0)

    # --- PerResidueEncoder features (one-hot aa placement of local coords)
    oh = jax.nn.one_hot(aa, 21, dtype=jnp.float32)                 # (1, L, 21)
    crd_feat = (oh[..., None, None] * crd14[:, :, None, :, :]).reshape(1, L, 21 * 14 * 3)
    aa_feat = params["aatype_emb"][aa]                             # (1, L, D)
    feat_in = jnp.concatenate([crd_feat, aa_feat], axis=-1)[0]
    res_feat = residue_mlp_call(feat_in, params["res_mlp"])        # (L, D)

    # --- geometric attention encoder (all layers in one fused pallas_call)
    # TODO(synk): checkpoint config may select spatial_attn_mode='CB'; the
    # published IPA-style point attention path is implemented here.
    R9 = R[0].reshape(L, 9)
    t0 = t[0]
    mask_res = mask_atom[0, :, ATOM_CA].astype(jnp.float32)
    mrow = mask_res[:, None]
    mcol = mask_res[None, :]
    z = pair_feat[0]
    out = ga_encoder_call(res_feat, z, R9, t0, mrow, mcol, params["ga"])
    return out[None]                                               # (1, L, node_feat_dim)


# ----------------------------------------------------------------------------
# Deterministic parameter init (synthetic; the .pt checkpoint is not loaded).
# A real checkpoint would be repacked here: w_proj columns concatenated with
# point blocks permuted torch(head,point,coord) -> (coord,head,point); wo
# point/direction rows permuted (head,point,coord) -> (head,coord,point);
# softplus applied to the raw spatial_coef.
# ----------------------------------------------------------------------------
def init_params(key):
    D, Z, H, C, V, P, PV = (CFG[k] for k in ("D", "Z", "H", "C", "V", "P", "PV"))
    n_layers = CFG["layers"]
    max_relpos = CFG["max_relpos"]
    keys = iter(jax.random.split(key, 64))

    def nrm(shape, scale=0.1):
        return scale * jax.random.normal(next(keys), shape, dtype=jnp.float32)

    HC, HV, HP, HPV = H * C, H * V, H * P, H * PV
    PROJ = 2 * HC + HV + 2 * 3 * HP + 3 * HPV
    F_IN = H * Z + HV + 3 * HPV + HPV + 3 * HPV

    spatial_scale = -math.sqrt(2.0 / (9.0 * P)) / 2.0
    gamma_raw = jnp.full((n_layers, H), math.log(math.e - 1.0), jnp.float32)
    coeff = jax.nn.softplus(gamma_raw) * spatial_scale             # softplus at "load" time
    bpb = nrm((n_layers, H))                                       # proj_pair_bias bias
    scal = jnp.concatenate([coeff, bpb], axis=-1).astype(jnp.float32)   # (layers, 2H)

    # per-layer row-vector bundle: [bo, ln1_g, ln1_b, bt1, bt2, bt3, ln2_g, ln2_b]
    vecs = jnp.zeros((n_layers, 8, D), jnp.float32)
    vecs = vecs.at[:, 1].set(1.0).at[:, 6].set(1.0)

    params = {
        "relpos_emb": nrm((2 * max_relpos + 2, Z), 0.5),
        "aatype_emb": nrm((21, D), 0.5),
        "res_mlp": {
            "w1": nrm((21 * 14 * 3 + D, 2 * D)), "b1": jnp.zeros((1, 2 * D), jnp.float32),
            "w2": nrm((2 * D, D)), "b2": jnp.zeros((1, D), jnp.float32),
            "w3": nrm((D, D)), "b3": jnp.zeros((1, D), jnp.float32),
            "w4": nrm((D, D)), "b4": jnp.zeros((1, D), jnp.float32),
        },
        "ga": {
            "wproj": nrm((n_layers, D, PROJ)),   # [q|k|v|q_pts|k_pts|v_pts]
            "wpbT": nrm((n_layers, Z, H)),       # proj_pair_bias weight (transposed)
            "wo": nrm((n_layers, F_IN, D)),      # [p2n|node|points|dist|direction]
            "wt": nrm((n_layers, 3 * D, D)),     # transition Linear stack
            "vecs": vecs,
            "scal": scal,
        },
    }
    return params


if __name__ == "__main__":
    L = 8
    key = jax.random.PRNGKey(0)
    k_param, k_pos, k_aa = jax.random.split(key, 3)

    params = init_params(k_param)

    # Build the (L, 59) node-feature matrix exactly as DDGBackbone expects.
    pos = 3.0 * jax.random.normal(k_pos, (L, 14, 3), dtype=jnp.float32)
    aa = jax.random.randint(k_aa, (L,), 0, 21)
    seq = jnp.arange(L, dtype=jnp.int32)
    chain = (jnp.arange(L) >= L // 2).astype(jnp.int32)
    atom_mask = jnp.ones((L, 14), jnp.float32)
    x_nodes = jnp.concatenate(
        [pos.reshape(L, 42),
         aa.astype(jnp.float32)[:, None],
         seq.astype(jnp.float32)[:, None],
         chain.astype(jnp.float32)[:, None],
         atom_mask],
        axis=1)  # (8, 59)

    out = ddg_backbone_forward(x_nodes, params)   # (1, L, node_feat_dim)
    jax.block_until_ready(out)
    assert out.shape == (1, L, CFG["D"])
    assert bool(jnp.all(jnp.isfinite(out)))
    print("KERNEL_OK")
</pallas_src>

<mosaic_0001>
module attributes {stable_mosaic.version = 11 : i64} {
  func.func @residue_mlp_kernel(%arg0: memref<8x1010xf32, #tpu.memory_space<vmem>>, %arg1: memref<1010x256xf32, #tpu.memory_space<vmem>>, %arg2: memref<1x256xf32, #tpu.memory_space<vmem>>, %arg3: memref<256x128xf32, #tpu.memory_space<vmem>>, %arg4: memref<1x128xf32, #tpu.memory_space<vmem>>, %arg5: memref<128x128xf32, #tpu.memory_space<vmem>>, %arg6: memref<1x128xf32, #tpu.memory_space<vmem>>, %arg7: memref<128x128xf32, #tpu.memory_space<vmem>>, %arg8: memref<1x128xf32, #tpu.memory_space<vmem>>, %arg9: memref<8x128xf32, #tpu.memory_space<vmem>>) attributes {dimension_semantics = [], scalar_prefetch = 0 : i64, scratch_operands = 0 : i64, tpu.core_type = #tpu.core_type<tc>} {
    %c0 = arith.constant 0 : index
    %c0_0 = arith.constant 0 : index
    %0 = vector.load %arg0[%c0, %c0_0] : memref<8x1010xf32, #tpu.memory_space<vmem>>, vector<8x1010xf32>
    %c0_1 = arith.constant 0 : index
    %c0_2 = arith.constant 0 : index
    %1 = vector.load %arg1[%c0_1, %c0_2] : memref<1010x256xf32, #tpu.memory_space<vmem>>, vector<1010x256xf32>
    %cst = arith.constant dense<0.000000e+00> : vector<8x256xf32>
    %2 = tpu.matmul %0, %1, %cst {dimension_numbers = #tpu.dot_dimension_numbers<[1], [0], [0], [1], [0, 0, 1, 1], [], []>} : vector<8x1010xf32>, vector<1010x256xf32>, vector<8x256xf32> -> vector<8x256xf32>
    %c0_3 = arith.constant 0 : index
    %c0_4 = arith.constant 0 : index
    %3 = vector.load %arg2[%c0_3, %c0_4] : memref<1x256xf32, #tpu.memory_space<vmem>>, vector<1x256xf32>
    %4 = vector.broadcast %3 : vector<1x256xf32> to vector<8x256xf32>
    %5 = arith.addf %2, %4 : vector<8x256xf32>
    %cst_5 = arith.constant 0.000000e+00 : f32
    %6 = vector.broadcast %cst_5 : f32 to vector<8x256xf32>
    %7 = arith.maximumf %5, %6 : vector<8x256xf32>
    %c0_6 = arith.constant 0 : index
    %c0_7 = arith.constant 0 : index
    %8 = vector.load %arg3[%c0_6, %c0_7] : memref<256x128xf32, #tpu.memory_space<vmem>>, vector<256x128xf32>
    %cst_8 = arith.constant dense<0.000000e+00> : vector<8x128xf32>
    %9 = tpu.matmul %7, %8, %cst_8 {dimension_numbers = #tpu.dot_dimension_numbers<[1], [0], [0], [1], [0, 0, 1, 1], [], []>} : vector<8x256xf32>, vector<256x128xf32>, vector<8x128xf32> -> vector<8x128xf32>
    %c0_9 = arith.constant 0 : index
    %c0_10 = arith.constant 0 : index
    %10 = vector.load %arg4[%c0_9, %c0_10] : memref<1x128xf32, #tpu.memory_space<vmem>>, vector<1x128xf32>
    %11 = vector.broadcast %10 : vector<1x128xf32> to vector<8x128xf32>
    %12 = arith.addf %9, %11 : vector<8x128xf32>
    %cst_11 = arith.constant 0.000000e+00 : f32
    %13 = vector.broadcast %cst_11 : f32 to vector<8x128xf32>
    %14 = arith.maximumf %12, %13 : vector<8x128xf32>
    %c0_12 = arith.constant 0 : index
    %c0_13 = arith.constant 0 : index
    %15 = vector.load %arg5[%c0_12, %c0_13] : memref<128x128xf32, #tpu.memory_space<vmem>>, vector<128x128xf32>
    %cst_14 = arith.constant dense<0.000000e+00> : vector<8x128xf32>
    %16 = tpu.matmul %14, %15, %cst_14 {dimension_numbers = #tpu.dot_dimension_numbers<[1], [0], [0], [1], [0, 0, 1, 1], [], []>} : vector<8x128xf32>, vector<128x128xf32>, vector<8x128xf32> -> vector<8x128xf32>
    %c0_15 = arith.constant 0 : index
    %c0_16 = arith.constant 0 : index
    %17 = vector.load %arg6[%c0_15, %c0_16] : memref<1x128xf32, #tpu.memory_space<vmem>>, vector<1x128xf32>
    %18 = vector.broadcast %17 : vector<1x128xf32> to vector<8x128xf32>
    %19 = arith.addf %16, %18 : vector<8x128xf32>
    %cst_17 = arith.constant 0.000000e+00 : f32
    %20 = vector.broadcast %cst_17 : f32 to vector<8x128xf32>
    %21 = arith.maximumf %19, %20 : vector<8x128xf32>
    %c0_18 = arith.constant 0 : index
    %c0_19 = arith.constant 0 : index
    %22 = vector.load %arg7[%c0_18, %c0_19] : memref<128x128xf32, #tpu.memory_space<vmem>>, vector<128x128xf32>
    %cst_20 = arith.constant dense<0.000000e+00> : vector<8x128xf32>
    %23 = tpu.matmul %21, %22, %cst_20 {dimension_numbers = #tpu.dot_dimension_numbers<[1], [0], [0], [1], [0, 0, 1, 1], [], []>} : vector<8x128xf32>, vector<128x128xf32>, vector<8x128xf32> -> vector<8x128xf32>
    %c0_21 = arith.constant 0 : index
    %c0_22 = arith.constant 0 : index
    %24 = vector.load %arg8[%c0_21, %c0_22] : memref<1x128xf32, #tpu.memory_space<vmem>>, vector<1x128xf32>
    %25 = vector.broadcast %24 : vector<1x128xf32> to vector<8x128xf32>
    %26 = arith.addf %23, %25 : vector<8x128xf32>
    %c0_23 = arith.constant 0 : index
    %c0_24 = arith.constant 0 : index
    %27 = vector.load %arg9[%c0_23, %c0_24] : memref<8x128xf32, #tpu.memory_space<vmem>>, vector<8x128xf32>
    tpu.vector_store %arg9[%c0_23, %c0_24], %26 {strides = array<i32>} : memref<8x128xf32, #tpu.memory_space<vmem>>, vector<8x128xf32>,
    return
  }
}

</mosaic_0001>

<llo_original>
// kernel: tpu_custom_call.1
$region0: #{tpu_custom_call.1}
  #allocation0 [shape = 'u32[]', space=smem, size = 0x4, offset = 0x4, fixed_abs, tag = 'smem constant byte address 0x4 - core index']
  #allocation1 [shape = 'u32[144,128]{1,0:T(1,128)}', space=vmem, size = 0x12000, scoped, tag = 'internal scratch']
  %s0 = inlined_call_operand.hbm [shape: f32[8,1010], index: 0, kind: input, shape index: {}]
  %s1 = inlined_call_operand.hbm [shape: f32[1010,256], index: 1, kind: input, shape index: {}]
  %s2 = inlined_call_operand.vmem [shape: f32[1,256], index: 2, kind: input, shape index: {}]
  %s3 = inlined_call_operand.hbm [shape: f32[256,128], index: 3, kind: input, shape index: {}]
  %s4 = inlined_call_operand.vmem [shape: f32[1,128], index: 4, kind: input, shape index: {}]
  %s5 = inlined_call_operand.hbm [shape: f32[128,128], index: 5, kind: input, shape index: {}]
  %s6 = inlined_call_operand.vmem [shape: f32[1,128], index: 6, kind: input, shape index: {}]
  %s7 = inlined_call_operand.hbm [shape: f32[128,128], index: 7, kind: input, shape index: {}]
  %s8 = inlined_call_operand.vmem [shape: f32[1,128], index: 8, kind: input, shape index: {}]
  %s9 = inlined_call_operand.hbm [shape: f32[8,128], index: 9, kind: output, shape index: {}]
  %s10 = sld [smem:[#allocation0]]
  $region66: #{tpu_custom_call.1} parent=0
    _
  %s12 = ssub.s32 1, %s10
  %s13 = scalar_select 0, %s12, %s10
  $region1: #{tpu_custom_call.1} parent=0
    #allocation2 [shape = 'u8[32768]{0}', space=vmem, size = 0x8000, scoped, tag = 'input window, operand 0, single buffered']
    #allocation3 [shape = 's32[1]{0}', space=sflag, size = 0x4, scoped, tag = 'scoped memory for tpu_custom_call.1']
    #allocation4 [shape = 's32[1]{0}', space=sflag, size = 0x4, scoped, tag = 'scoped memory for tpu_custom_call.1']
    #allocation5 [shape = 'u8[1040384]{0}', space=vmem, size = 0xfe000, scoped, tag = 'input window, operand 1, single buffered']
    #allocation6 [shape = 's32[1]{0}', space=sflag, size = 0x4, scoped, tag = 'scoped memory for tpu_custom_call.1']
    #allocation7 [shape = 'u8[131072]{0}', space=vmem, size = 0x20000, scoped, tag = 'input window, operand 3, single buffered']
    #allocation8 [shape = 'u8[65536]{0}', space=vmem, size = 0x10000, scoped, tag = 'input window, operand 5, single buffered']
    #allocation9 [shape = 's32[1]{0}', space=sflag, size = 0x4, scoped, tag = 'scoped memory for tpu_custom_call.1']
    #allocation10 [shape = 'u8[65536]{0}', space=vmem, size = 0x10000, scoped, tag = 'input window, operand 7, single buffered']
    #allocation11 [shape = 'u8[4096]{0}', space=vmem, size = 0x1000, scoped, tag = 'output window, operand 0, single buffered']
    %14 = vsyncpa [#allocation3], 0
    %15 = vsyncpa [#allocation6], 0
    %16 = vsyncpa [#allocation9], 0
    %17 = vsyncpa [#allocation4], 0
    // Predicated region
    $region2: #{tpu_custom_call.1} parent=1 // pred_check
      _
    $region3: #{tpu_custom_call.1} parent=1 // pred_check_branch
      %19 = sbr.rel (0) target = $region5
    $region4: #{tpu_custom_call.1} parent=1 // pred_region
      %s21 = ssub.s32 1024, 1024
      %22 = vsyncadd [#allocation3], %s21
      %s24 = sshll.u32 [#allocation2], 4
      %s25 = int_to_ptr.vmem [resolvable:$true] %s24
      %27 = dma.hbm_to_vmem [thread:$0]  %s0, 1024, %s25, [#allocation3]
    $region5: #{tpu_custom_call.1} parent=1 // pred_fallthru
      _
    // Predicated region
    $region6: #{tpu_custom_call.1} parent=1 // pred_check
      _
    $region7: #{tpu_custom_call.1} parent=1 // pred_check_branch
      %29 = sbr.rel (0) target = $region9
    $region8: #{tpu_custom_call.1} parent=1 // pred_region
      %s31 = ssub.s32 32512, 32512
      %32 = vsyncadd [#allocation6], %s31
      %s33 = sshll.u32 [#allocation5], 4
      %s34 = int_to_ptr.vmem [resolvable:$true] %s33
      %39 = dma.hbm_to_vmem [thread:$0]  %s1, 32512, %s34, [#allocation6], 256, 256, 16
    $region9: #{tpu_custom_call.1} parent=1 // pred_fallthru
      _
    // Predicated region
    $region10: #{tpu_custom_call.1} parent=1 // pred_check
      _
    $region11: #{tpu_custom_call.1} parent=1 // pred_check_branch
      %41 = sbr.rel (0) target = $region13
    $region12: #{tpu_custom_call.1} parent=1 // pred_region
      _
    $region13: #{tpu_custom_call.1} parent=1 // pred_fallthru
      _
    // Predicated region
    $region14: #{tpu_custom_call.1} parent=1 // pred_check
      _
    $region15: #{tpu_custom_call.1} parent=1 // pred_check_branch
      %43 = sbr.rel (0) target = $region17
    $region16: #{tpu_custom_call.1} parent=1 // pred_region
      %s45 = ssub.s32 4096, 4096
      %46 = vsyncadd [#allocation6], %s45
      %s47 = sshll.u32 [#allocation7], 4
      %s48 = int_to_ptr.vmem [resolvable:$true] %s47
      %53 = dma.hbm_to_vmem [thread:$0]  %s3, 4096, %s48, [#allocation6], 128, 128, 8
    $region17: #{tpu_custom_call.1} parent=1 // pred_fallthru
      _
    // Predicated region
    $region18: #{tpu_custom_call.1} parent=1 // pred_check
      _
    $region19: #{tpu_custom_call.1} parent=1 // pred_check_branch
      %55 = sbr.rel (0) target = $region21
    $region20: #{tpu_custom_call.1} parent=1 // pred_region
      _
    $region21: #{tpu_custom_call.1} parent=1 // pred_fallthru
      _
    // Predicated region
    $region22: #{tpu_custom_call.1} parent=1 // pred_check
      _
    $region23: #{tpu_custom_call.1} parent=1 // pred_check_branch
      %57 = sbr.rel (0) target = $region25
    $region24: #{tpu_custom_call.1} parent=1 // pred_region
      %s59 = ssub.s32 2048, 2048
      %60 = vsyncadd [#allocation9], %s59
      %s61 = sshll.u32 [#allocation8], 4
      %s62 = int_to_ptr.vmem [resolvable:$true] %s61
      %67 = dma.hbm_to_vmem [thread:$0]  %s5, 2048, %s62, [#allocation9], 128, 128, 8
    $region25: #{tpu_custom_call.1} parent=1 // pred_fallthru
      _
    // Predicated region
    $region26: #{tpu_custom_call.1} parent=1 // pred_check
      _
    $region27: #{tpu_custom_call.1} parent=1 // pred_check_branch
      %69 = sbr.rel (0) target = $region29
    $region28: #{tpu_custom_call.1} parent=1 // pred_region
      _
    $region29: #{tpu_custom_call.1} parent=1 // pred_fallthru
      _
    // Predicated region
    $region30: #{tpu_custom_call.1} parent=1 // pred_check
      _
    $region31: #{tpu_custom_call.1} parent=1 // pred_check_branch
      %71 = sbr.rel (0) target = $region33
    $region32: #{tpu_custom_call.1} parent=1 // pred_region
      %s73 = ssub.s32 2048, 2048
      %74 = vsyncadd [#allocation9], %s73
      %s75 = sshll.u32 [#allocation10], 4
      %s76 = int_to_ptr.vmem [resolvable:$true] %s75
      %81 = dma.hbm_to_vmem [thread:$0]  %s7, 2048, %s76, [#allocation9], 128, 128, 8
    $region33: #{tpu_custom_call.1} parent=1 // pred_fallthru
      _
    // Predicated region
    $region34: #{tpu_custom_call.1} parent=1 // pred_check
      _
    $region35: #{tpu_custom_call.1} parent=1 // pred_check_branch
      %83 = sbr.rel (0) target = $region37
    $region36: #{tpu_custom_call.1} parent=1 // pred_region
      _
    $region37: #{tpu_custom_call.1} parent=1 // pred_fallthru
      _
    // Predicated region
    $region38: #{tpu_custom_call.1} parent=1 // pred_check
      _
    $region39: #{tpu_custom_call.1} parent=1 // pred_check_branch
      %85 = sbr.rel (0) target = $region41
    $region40: #{tpu_custom_call.1} parent=1 // pred_region
      %86 = dma.done [#allocation3], 1024
    $region41: #{tpu_custom_call.1} parent=1 // pred_fallthru
      _
    // Predicated region
    $region42: #{tpu_custom_call.1} parent=1 // pred_check
      _
    $region43: #{tpu_custom_call.1} parent=1 // pred_check_branch
      %88 = sbr.rel (0) target = $region45
    $region44: #{tpu_custom_call.1} parent=1 // pred_region
      %89 = dma.done [#allocation6], 32512
    $region45: #{tpu_custom_call.1} parent=1 // pred_fallthru
      _
    // Predicated region
    $region46: #{tpu_custom_call.1} parent=1 // pred_check
      _
    $region47: #{tpu_custom_call.1} parent=1 // pred_check_branch
      %91 = sbr.rel (0) target = $region49
    $region48: #{tpu_custom_call.1} parent=1 // pred_region
      %92 = dma.done [#allocation6], 4096
    $region49: #{tpu_custom_call.1} parent=1 // pred_fallthru
      _
    // Predicated region
    $region50: #{tpu_custom_call.1} parent=1 // pred_check
      _
    $region51: #{tpu_custom_call.1} parent=1 // pred_check_branch
      %94 = sbr.rel (0) target = $region53
    $region52: #{tpu_custom_call.1} parent=1 // pred_region
      %95 = dma.done [#allocation9], 2048
    $region53: #{tpu_custom_call.1} parent=1 // pred_fallthru
      _
    // Predicated region
    $region54: #{tpu_custom_call.1} parent=1 // pred_check
      _
    $region55: #{tpu_custom_call.1} parent=1 // pred_check_branch
      %97 = sbr.rel (0) target = $region57
    $region56: #{tpu_custom_call.1} parent=1 // pred_region
      %98 = dma.done [#allocation9], 2048
    $region57: #{tpu_custom_call.1} parent=1 // pred_fallthru
      _
    %v99 = vld [vmem:[#allocation2] sm:$0xff]
    %v100 = vld [vmem:[#allocation2 + $0x8] sm:$0xff]
    %v101 = vld [vmem:[#allocation2 + $0x10] sm:$0xff]
    %v102 = vld [vmem:[#allocation2 + $0x18] sm:$0xff]
    %v103 = vld [vmem:[#allocation2 + $0x20] sm:$0xff]
    %v104 = vld [vmem:[#allocation2 + $0x28] sm:$0xff]
    %v105 = vld [vmem:[#allocation2 + $0x30] sm:$0xff]
    %v106 = vld [vmem:[#allocation2 + $0x38] sm:$0xff]
    %v107 = vld [vmem:[#allocation5] sm:$0xff]
    %v108 = vld [vmem:[#allocation5 + $0x8] sm:$0xff]
    %v109 = vld [vmem:[#allocation5 + $0x10] sm:$0xff]
    %v110 = vld [vmem:[#allocation5 + $0x18] sm:$0xff]
    %v111 = vld [vmem:[#allocation5 + $0x20] sm:$0xff]
    %v112 = vld [vmem:[#allocation5 + $0x28] sm:$0xff]
    %v113 = vld [vmem:[#allocation5 + $0x30] sm:$0xff]
    %v114 = vld [vmem:[#allocation5 + $0x38] sm:$0xff]
    %v115 = vld [vmem:[#allocation5 + $0x40] sm:$0xff]
    %v116 = vld [vmem:[#allocation5 + $0x48] sm:$0xff]
    %v117 = vld [vmem:[#allocation5 + $0x50] sm:$0xff]
    %v118 = vld [vmem:[#allocation5 + $0x58] sm:$0xff]
    %v119 = vld [vmem:[#allocation5 + $0x60] sm:$0xff]
    %v120 = vld [vmem:[#allocation5 + $0x68] sm:$0xff]
    %v121 = vld [vmem:[#allocation5 + $0x70] sm:$0xff]
    %v122 = vld [vmem:[#allocation5 + $0x78] sm:$0xff]
    %v123 = vld [vmem:[#allocation5 + $0x80] sm:$0xff]
    %v124 = vld [vmem:[#allocation5 + $0x88] sm:$0xff]
    %v125 = vld [vmem:[#allocation5 + $0x90] sm:$0xff]
    %v126 = vld [vmem:[#allocation5 + $0x98] sm:$0xff]
    %v127 = vld [vmem:[#allocation5 + $0xa0] sm:$0xff]
    %v128 = vld [vmem:[#allocation5 + $0xa8] sm:$0xff]
    %v129 = vld [vmem:[#allocation5 + $0xb0] sm:$0xff]
    %v130 = vld [vmem:[#allocation5 + $0xb8] sm:$0xff]
    %v131 = vld [vmem:[#allocation5 + $0xc0] sm:$0xff]
    %v132 = vld [vmem:[#allocation5 + $0xc8] sm:$0xff]
    %v133 = vld [vmem:[#allocation5 + $0xd0] sm:$0xff]
    %v134 = vld [vmem:[#allocation5 + $0xd8] sm:$0xff]
    %v135 = vld [vmem:[#allocation5 + $0xe0] sm:$0xff]
    %v136 = vld [vmem:[#allocation5 + $0xe8] sm:$0xff]
    %v137 = vld [vmem:[#allocation5 + $0xf0] sm:$0xff]
    %v138 = vld [vmem:[#allocation5 + $0xf8] sm:$0xff]
    %v139 = vld [vmem:[#allocation5 + $0x100] sm:$0xff]
    %v140 = vld [vmem:[#allocation5 + $0x108] sm:$0xff]
    %v141 = vld [vmem:[#allocation5 + $0x110] sm:$0xff]
    %v142 = vld [vmem:[#allocation5 + $0x118] sm:$0xff]
    %v143 = vld [vmem:[#allocation5 + $0x120] sm:$0xff]
    %v144 = vld [vmem:[#allocation5 + $0x128] sm:$0xff]
    %v145 = vld [vmem:[#allocation5 + $0x130] sm:$0xff]
    %v146 = vld [vmem:[#allocation5 + $0x138] sm:$0xff]
    %v147 = vld [vmem:[#allocation5 + $0x140] sm:$0xff]
    %v148 = vld [vmem:[#allocation5 + $0x148] sm:$0xff]
    %v149 = vld [vmem:[#allocation5 + $0x150] sm:$0xff]
    %v150 = vld [vmem:[#allocation5 + $0x158] sm:$0xff]
    %v151 = vld [vmem:[#allocation5 + $0x160] sm:$0xff]
    %v152 = vld [vmem:[#allocation5 + $0x168] sm:$0xff]
    %v153 = vld [vmem:[#allocation5 + $0x170] sm:$0xff]
    %v154 = vld [vmem:[#allocation5 + $0x178] sm:$0xff]
    %v155 = vld [vmem:[#allocation5 + $0x180] sm:$0xff]
    %v156 = vld [vmem:[#allocation5 + $0x188] sm:$0xff]
    %v157 = vld [vmem:[#allocation5 + $0x190] sm:$0xff]
    %v158 = vld [vmem:[#allocation5 + $0x198] sm:$0xff]
    %v159 = vld [vmem:[#allocation5 + $0x1a0] sm:$0xff]
    %v160 = vld [vmem:[#allocation5 + $0x1a8] sm:$0xff]
    %v161 = vld [vmem:[#allocation5 + $0x1b0] sm:$0xff]
    %v162 = vld [vmem:[#allocation5 + $0x1b8] sm:$0xff]
    %v163 = vld [vmem:[#allocation5 + $0x1c0] sm:$0xff]
    %v164 = vld [vmem:[#allocation5 + $0x1c8] sm:$0xff]
    %v165 = vld [vmem:[#allocation5 + $0x1d0] sm:$0xff]
    %v166 = vld [vmem:[#allocation5 + $0x1d8] sm:$0xff]
    %v167 = vld [vmem:[#allocation5 + $0x1e0] sm:$0xff]
    %v168 = vld [vmem:[#allocation5 + $0x1e8] sm:$0xff]
    %v169 = vld [vmem:[#allocation5 + $0x1f0] sm:$0xff]
    %v170 = vld [vmem:[#allocation5 + $0x1f8] sm:$0xff]
    %v171 = vld [vmem:[#allocation5 + $0x200] sm:$0xff]
    %v172 = vld [vmem:[#allocation5 + $0x208] sm:$0xff]
    %v173 = vld [vmem:[#allocation5 + $0x210] sm:$0xff]
    %v174 = vld [vmem:[#allocation5 + $0x218] sm:$0xff]
    %v175 = vld [vmem:[#allocation5 + $0x220] sm:$0xff]
    %v176 = vld [vmem:[#allocation5 + $0x228] sm:$0xff]
    %v177 = vld [vmem:[#allocation5 + $0x230] sm:$0xff]
    %v178 = vld [vmem:[#allocation5 + $0x238] sm:$0xff]
    %v179 = vld [vmem:[#allocation5 + $0x240] sm:$0xff]
    %v180 = vld [vmem:[#allocation5 + $0x248] sm:$0xff]
    %v181 = vld [vmem:[#allocation5 + $0x250] sm:$0xff]
    %v182 = vld [vmem:[#allocation5 + $0x258] sm:$0xff]
    %v183 = vld [vmem:[#allocation5 + $0x260] sm:$0xff]
    %v184 = vld [vmem:[#allocation5 + $0x268] sm:$0xff]
    %v185 = vld [vmem:[#allocation5 + $0x270] sm:$0xff]
    %v186 = vld [vmem:[#allocation5 + $0x278] sm:$0xff]
    %v187 = vld [vmem:[#allocation5 + $0x280] sm:$0xff]
    %v188 = vld [vmem:[#allocation5 + $0x288] sm:$0xff]
    %v189 = vld [vmem:[#allocation5 + $0x290] sm:$0xff]
    %v190 = vld [vmem:[#allocation5 + $0x298] sm:$0xff]
    %v191 = vld [vmem:[#allocation5 + $0x2a0] sm:$0xff]
    %v192 = vld [vmem:[#allocation5 + $0x2a8] sm:$0xff]
    %v193 = vld [vmem:[#allocation5 + $0x2b0] sm:$0xff]
    %v194 = vld [vmem:[#allocation5 + $0x2b8] sm:$0xff]
    %v195 = vld [vmem:[#allocation5 + $0x2c0] sm:$0xff]
    %v196 = vld [vmem:[#allocation5 + $0x2c8] sm:$0xff]
    %v197 = vld [vmem:[#allocation5 + $0x2d0] sm:$0xff]
    %v198 = vld [vmem:[#allocation5 + $0x2d8] sm:$0xff]
    %v199 = vld [vmem:[#allocation5 + $0x2e0] sm:$0xff]
    %v200 = vld [vmem:[#allocation5 + $0x2e8] sm:$0xff]
    %v201 = vld [vmem:[#allocation5 + $0x2f0] sm:$0xff]
    %v202 = vld [vmem:[#allocation5 + $0x2f8] sm:$0xff]
    %v203 = vld [vmem:[#allocation5 + $0x300] sm:$0xff]
    %v204 = vld [vmem:[#allocation5 + $0x308] sm:$0xff]
    %v205 = vld [vmem:[#allocation5 + $0x310] sm:$0xff]
    %v206 = vld [vmem:[#allocation5 + $0x318] sm:$0xff]
    %v207 = vld [vmem:[#allocation5 + $0x320] sm:$0xff]
    %v208 = vld [vmem:[#allocation5 + $0x328] sm:$0xff]
    %v209 = vld [vmem:[#allocation5 + $0x330] sm:$0xff]
    %v210 = vld [vmem:[#allocation5 + $0x338] sm:$0xff]
    %v211 = vld [vmem:[#allocation5 + $0x340] sm:$0xff]
    %v212 = vld [vmem:[#allocation5 + $0x348] sm:$0xff]
    %v213 = vld [vmem:[#allocation5 + $0x350] sm:$0xff]
    %v214 = vld [vmem:[#allocation5 + $0x358] sm:$0xff]
    %v215 = vld [vmem:[#allocation5 + $0x360] sm:$0xff]
    %v216 = vld [vmem:[#allocation5 + $0x368] sm:$0xff]
    %v217 = vld [vmem:[#allocation5 + $0x370] sm:$0xff]
    %v218 = vld [vmem:[#allocation5 + $0x378] sm:$0xff]
    %v219 = vld [vmem:[#allocation5 + $0x380] sm:$0xff]
    %v220 = vld [vmem:[#allocation5 + $0x388] sm:$0xff]
    %v221 = vld [vmem:[#allocation5 + $0x390] sm:$0xff]
    %v222 = vld [vmem:[#allocation5 + $0x398] sm:$0xff]
    %v223 = vld [vmem:[#allocation5 + $0x3a0] sm:$0xff]
    %v224 = vld [vmem:[#allocation5 + $0x3a8] sm:$0xff]
    %v225 = vld [vmem:[#allocation5 + $0x3b0] sm:$0xff]
    %v226 = vld [vmem:[#allocation5 + $0x3b8] sm:$0xff]
    %v227 = vld [vmem:[#allocation5 + $0x3c0] sm:$0xff]
    %v228 = vld [vmem:[#allocation5 + $0x3c8] sm:$0xff]
    %v229 = vld [vmem:[#allocation5 + $0x3d0] sm:$0xff]
    %v230 = vld [vmem:[#allocation5 + $0x3d8] sm:$0xff]
    %v231 = vld [vmem:[#allocation5 + $0x3e0] sm:$0xff]
    %v232 = vld [vmem:[#allocation5 + $0x3e8] sm:$0xff]
    %v233 = vld [vmem:[#allocation5 + $0x3f0] sm:$0xff]
    %v234 = vld [vmem:[#allocation5 + $0x3f8] sm:$0xff]
    %v235 = vld [vmem:[#allocation5 + $0x400] sm:$0xff]
    %v236 = vld [vmem:[#allocation5 + $0x408] sm:$0xff]
    %v237 = vld [vmem:[#allocation5 + $0x410] sm:$0xff]
    %v238 = vld [vmem:[#allocation5 + $0x418] sm:$0xff]
    %v239 = vld [vmem:[#allocation5 + $0x420] sm:$0xff]
    %v240 = vld [vmem:[#allocation5 + $0x428] sm:$0xff]
    %v241 = vld [vmem:[#allocation5 + $0x430] sm:$0xff]
    %v242 = vld [vmem:[#allocation5 + $0x438] sm:$0xff]
    %v243 = vld [vmem:[#allocation5 + $0x440] sm:$0xff]
    %v244 = vld [vmem:[#allocation5 + $0x448] sm:$0xff]
    %v245 = vld [vmem:[#allocation5 + $0x450] sm:$0xff]
    %v246 = vld [vmem:[#allocation5 + $0x458] sm:$0xff]
    %v247 = vld [vmem:[#allocation5 + $0x460] sm:$0xff]
    %v248 = vld [vmem:[#allocation5 + $0x468] sm:$0xff]
    %v249 = vld [vmem:[#allocation5 + $0x470] sm:$0xff]
    %v250 = vld [vmem:[#allocation5 + $0x478] sm:$0xff]
    %v251 = vld [vmem:[#allocation5 + $0x480] sm:$0xff]
    %v252 = vld [vmem:[#allocation5 + $0x488] sm:$0xff]
    %v253 = vld [vmem:[#allocation5 + $0x490] sm:$0xff]
    %v254 = vld [vmem:[#allocation5 + $0x498] sm:$0xff]
    %v255 = vld [vmem:[#allocation5 + $0x4a0] sm:$0xff]
    %v256 = vld [vmem:[#allocation5 + $0x4a8] sm:$0xff]
    %v257 = vld [vmem:[#allocation5 + $0x4b0] sm:$0xff]
    %v258 = vld [vmem:[#allocation5 + $0x4b8] sm:$0xff]
    %v259 = vld [vmem:[#allocation5 + $0x4c0] sm:$0xff]
    %v260 = vld [vmem:[#allocation5 + $0x4c8] sm:$0xff]
    %v261 = vld [vmem:[#allocation5 + $0x4d0] sm:$0xff]
    %v262 = vld [vmem:[#allocation5 + $0x4d8] sm:$0xff]
    %v263 = vld [vmem:[#allocation5 + $0x4e0] sm:$0xff]
    %v264 = vld [vmem:[#allocation5 + $0x4e8] sm:$0xff]
    %v265 = vld [vmem:[#allocation5 + $0x4f0] sm:$0xff]
    %v266 = vld [vmem:[#allocation5 + $0x4f8] sm:$0xff]
    %v267 = vld [vmem:[#allocation5 + $0x500] sm:$0xff]
    %v268 = vld [vmem:[#allocation5 + $0x508] sm:$0xff]
    %v269 = vld [vmem:[#allocation5 + $0x510] sm:$0xff]
    %v270 = vld [vmem:[#allocation5 + $0x518] sm:$0xff]
    %v271 = vld [vmem:[#allocation5 + $0x520] sm:$0xff]
    %v272 = vld [vmem:[#allocation5 + $0x528] sm:$0xff]
    %v273 = vld [vmem:[#allocation5 + $0x530] sm:$0xff]
    %v274 = vld [vmem:[#allocation5 + $0x538] sm:$0xff]
    %v275 = vld [vmem:[#allocation5 + $0x540] sm:$0xff]
    %v276 = vld [vmem:[#allocation5 + $0x548] sm:$0xff]
    %v277 = vld [vmem:[#allocation5 + $0x550] sm:$0xff]
    %v278 = vld [vmem:[#allocation5 + $0x558] sm:$0xff]
    %v279 = vld [vmem:[#allocation5 + $0x560] sm:$0xff]
    %v280 = vld [vmem:[#allocation5 + $0x568] sm:$0xff]
    %v281 = vld [vmem:[#allocation5 + $0x570] sm:$0xff]
    %v282 = vld [vmem:[#allocation5 + $0x578] sm:$0xff]
    %v283 = vld [vmem:[#allocation5 + $0x580] sm:$0xff]
    %v284 = vld [vmem:[#allocation5 + $0x588] sm:$0xff]
    %v285 = vld [vmem:[#allocation5 + $0x590] sm:$0xff]
    %v286 = vld [vmem:[#allocation5 + $0x598] sm:$0xff]
    %v287 = vld [vmem:[#allocation5 + $0x5a0] sm:$0xff]
    %v288 = vld [vmem:[#allocation5 + $0x5a8] sm:$0xff]
    %v289 = vld [vmem:[#allocation5 + $0x5b0] sm:$0xff]
    %v290 = vld [vmem:[#allocation5 + $0x5b8] sm:$0xff]
    %v291 = vld [vmem:[#allocation5 + $0x5c0] sm:$0xff]
    %v292 = vld [vmem:[#allocation5 + $0x5c8] sm:$0xff]
    %v293 = vld [vmem:[#allocation5 + $0x5d0] sm:$0xff]
    %v294 = vld [vmem:[#allocation5 + $0x5d8] sm:$0xff]
    %v295 = vld [vmem:[#allocation5 + $0x5e0] sm:$0xff]
    %v296 = vld [vmem:[#allocation5 + $0x5e8] sm:$0xff]
    %v297 = vld [vmem:[#allocation5 + $0x5f0] sm:$0xff]
    %v298 = vld [vmem:[#allocation5 + $0x5f8] sm:$0xff]
    %v299 = vld [vmem:[#allocation5 + $0x600] sm:$0xff]
    %v300 = vld [vmem:[#allocation5 + $0x608] sm:$0xff]
    %v301 = vld [vmem:[#allocation5 + $0x610] sm:$0xff]
    %v302 = vld [vmem:[#allocation5 + $0x618] sm:$0xff]
    %v303 = vld [vmem:[#allocation5 + $0x620] sm:$0xff]
    %v304 = vld [vmem:[#allocation5 + $0x628] sm:$0xff]
    %v305 = vld [vmem:[#allocation5 + $0x630] sm:$0xff]
    %v306 = vld [vmem:[#allocation5 + $0x638] sm:$0xff]
    %v307 = vld [vmem:[#allocation5 + $0x640] sm:$0xff]
    %v308 = vld [vmem:[#allocation5 + $0x648] sm:$0xff]
    %v309 = vld [vmem:[#allocation5 + $0x650] sm:$0xff]
    %v310 = vld [vmem:[#allocation5 + $0x658] sm:$0xff]
    %v311 = vld [vmem:[#allocation5 + $0x660] sm:$0xff]
    %v312 = vld [vmem:[#allocation5 + $0x668] sm:$0xff]
    %v313 = vld [vmem:[#allocation5 + $0x670] sm:$0xff]
    %v314 = vld [vmem:[#allocation5 + $0x678] sm:$0xff]
    %v315 = vld [vmem:[#allocation5 + $0x680] sm:$0xff]
    %v316 = vld [vmem:[#allocation5 + $0x688] sm:$0xff]
    %v317 = vld [vmem:[#allocation5 + $0x690] sm:$0xff]
    %v318 = vld [vmem:[#allocation5 + $0x698] sm:$0xff]
    %v319 = vld [vmem:[#allocation5 + $0x6a0] sm:$0xff]
    %v320 = vld [vmem:[#allocation5 + $0x6a8] sm:$0xff]
    %v321 = vld [vmem:[#allocation5 + $0x6b0] sm:$0xff]
    %v322 = vld [vmem:[#allocation5 + $0x6b8] sm:$0xff]
    %v323 = vld [vmem:[#allocation5 + $0x6c0] sm:$0xff]
    %v324 = vld [vmem:[#allocation5 + $0x6c8] sm:$0xff]
    %v325 = vld [vmem:[#allocation5 + $0x6d0] sm:$0xff]
    %v326 = vld [vmem:[#allocation5 + $0x6d8] sm:$0xff]
    %v327 = vld [vmem:[#allocation5 + $0x6e0] sm:$0xff]
    %v328 = vld [vmem:[#allocation5 + $0x6e8] sm:$0xff]
    %v329 = vld [vmem:[#allocation5 + $0x6f0] sm:$0xff]
    %v330 = vld [vmem:[#allocation5 + $0x6f8] sm:$0xff]
    %v331 = vld [vmem:[#allocation5 + $0x700] sm:$0xff]
    %v332 = vld [vmem:[#allocation5 + $0x708] sm:$0xff]
    %v333 = vld [vmem:[#allocation5 + $0x710] sm:$0xff]
    %v334 = vld [vmem:[#allocation5 + $0x718] sm:$0xff]
    %v335 = vld [vmem:[#allocation5 + $0x720] sm:$0xff]
    %v336 = vld [vmem:[#allocation5 + $0x728] sm:$0xff]
    %v337 = vld [vmem:[#allocation5 + $0x730] sm:$0xff]
    %v338 = vld [vmem:[#allocation5 + $0x738] sm:$0xff]
    %v339 = vld [vmem:[#allocation5 + $0x740] sm:$0xff]
    %v340 = vld [vmem:[#allocation5 + $0x748] sm:$0xff]
    %v341 = vld [vmem:[#allocation5 + $0x750] sm:$0xff]
    %v342 = vld [vmem:[#allocation5 + $0x758] sm:$0xff]
    %v343 = vld [vmem:[#allocation5 + $0x760] sm:$0xff]
    %v344 = vld [vmem:[#allocation5 + $0x768] sm:$0xff]
    %v345 = vld [vmem:[#allocation5 + $0x770] sm:$0xff]
    %v346 = vld [vmem:[#allocation5 + $0x778] sm:$0xff]
    %v347 = vld [vmem:[#allocation5 + $0x780] sm:$0xff]
    %v348 = vld [vmem:[#allocation5 + $0x788] sm:$0xff]
    %v349 = vld [vmem:[#allocation5 + $0x790] sm:$0xff]
    %v350 = vld [vmem:[#allocation5 + $0x798] sm:$0xff]
    %v351 = vld [vmem:[#allocation5 + $0x7a0] sm:$0xff]
    %v352 = vld [vmem:[#allocation5 + $0x7a8] sm:$0xff]
    %v353 = vld [vmem:[#allocation5 + $0x7b0] sm:$0xff]
    %v354 = vld [vmem:[#allocation5 + $0x7b8] sm:$0xff]
    %v355 = vld [vmem:[#allocation5 + $0x7c0] sm:$0xff]
    %v356 = vld [vmem:[#allocation5 + $0x7c8] sm:$0xff]
    %v357 = vld [vmem:[#allocation5 + $0x7d0] sm:$0xff]
    %v358 = vld [vmem:[#allocation5 + $0x7d8] sm:$0xff]
    %v359 = vld [vmem:[#allocation5 + $0x7e0] sm:$0x3]
    %v360 = vld [vmem:[#allocation5 + $0x7e8] sm:$0x3]
    %v361 = vld [vmem:[%s2] sm:$0x3]
    %v363 = vlaneseq
    %v364 = vshrl.u32 %v363, 7
    %v365 = vsub.s32 0, %v364
    %v366 = vrot.slane %v361, %v365
    %v367 = vlaneseq
    %v368 = vshrl.u32 %v367, 7
    %v369 = vsub.s32 1, %v368
    %v370 = vrot.slane %v361, %v369
    %vm373 = vcmask 932864
    %v375 = vsel %vm373, %v106, 0
    %vm377 = vcmask 1041408
    %v379 = vsel %vm377, %v359, 0
    %v382 = vsel %vm377, %v360, 0
    %384 = vmatprep.subr.mxu0 %v138
    %385 = vmatpush1.msra.mxu0 %v137
    %386 = vmatprep.subr.mxu0 %v136
    %387 = vmatpush1.msra.mxu0 %v135
    %388 = vmatprep.subr.mxu0 %v134
    %389 = vmatpush1.msra.mxu0 %v133
    %390 = vmatprep.subr.mxu0 %v132
    %391 = vmatpush1.msra.mxu0 %v131
    %392 = vmatprep.subr.mxu0 %v130
    %393 = vmatpush1.msra.mxu0 %v129
    %394 = vmatprep.subr.mxu0 %v128
    %395 = vmatpush1.msra.mxu0 %v127
    %396 = vmatprep.subr.mxu0 %v126
    %397 = vmatpush1.msra.mxu0 %v125
    %398 = vmatprep.subr.mxu0 %v124
    %399 = vmatpush1.msra.mxu0 %v123
    %400 = vmatprep.subr.mxu0 %v122
    %401 = vmatpush1.msra.mxu0 %v121
    %402 = vmatprep.subr.mxu0 %v120
    %403 = vmatpush1.msra.mxu0 %v119
    %404 = vmatprep.subr.mxu0 %v118
    %405 = vmatpush1.msra.mxu0 %v117
    %406 = vmatprep.subr.mxu0 %v116
    %407 = vmatpush1.msra.mxu0 %v115
    %408 = vmatprep.subr.mxu0 %v114
    %409 = vmatpush1.msra.mxu0 %v113
    %410 = vmatprep.subr.mxu0 %v112
    %411 = vmatpush1.msra.mxu0 %v111
    %412 = vmatprep.subr.mxu0 %v110
    %413 = vmatpush1.msra.mxu0 %v109
    %414 = vmatprep.subr.mxu0 %v108
    %415 = vmatpush1.msra.mxu0 %v107
    %416 = vmatprep.subr.mxu0 %v170
    %417 = vmatpush2.msra.mxu0 %v169
    %418 = vmatprep.subr.mxu0 %v168
    %419 = vmatpush2.msra.mxu0 %v167
    %420 = vmatprep.subr.mxu0 %v166
    %421 = vmatpush2.msra.mxu0 %v165
    %422 = vmatprep.subr.mxu0 %v164
    %423 = vmatpush2.msra.mxu0 %v163
    %424 = vmatprep.subr.mxu0 %v162
    %425 = vmatpush2.msra.mxu0 %v161
    %426 = vmatprep.subr.mxu0 %v160
    %427 = vmatpush2.msra.mxu0 %v159
    %428 = vmatprep.subr.mxu0 %v158
    %429 = vmatpush2.msra.mxu0 %v157
    %430 = vmatprep.subr.mxu0 %v156
    %431 = vmatpush2.msra.mxu0 %v155
    %432 = vmatprep.subr.mxu0 %v154
    %433 = vmatpush2.msra.mxu0 %v153
    %434 = vmatprep.subr.mxu0 %v152
    %435 = vmatpush2.msra.mxu0 %v151
    %436 = vmatprep.subr.mxu0 %v150
    %437 = vmatpush2.msra.mxu0 %v149
    %438 = vmatprep.subr.mxu0 %v148
    %439 = vmatpush2.msra.mxu0 %v147
    %440 = vmatprep.subr.mxu0 %v146
    %441 = vmatpush2.msra.mxu0 %v145
    %442 = vmatprep.subr.mxu0 %v144
    %443 = vmatpush2.msra.mxu0 %v143
    %444 = vmatprep.subr.mxu0 %v142
    %445 = vmatpush2.msra.mxu0 %v141
    %446 = vmatprep.subr.mxu0 %v140
    %447 = vmatpush2.msra.mxu0 %v139
    %448 = vmatprep.mubr.f32.mxu0 %v100
    %449 = vmatmul.mubr.f32.gmra.mxu0 %v99
    %v450 = vpop.f32.mrf.mxu0
    %v451 = vadd.f32 %v366, %v450
    %v452 = vpop.f32.mrf.mxu0
    %v453 = vadd.f32 %v370, %v452
    %454 = vdwg.mxu0
    %455 = vmatprep.subr.mxu0 %v202
    %456 = vmatpush1.msra.mxu0 %v201
    %457 = vmatprep.subr.mxu0 %v200
    %458 = vmatpush1.msra.mxu0 %v199
    %459 = vmatprep.subr.mxu0 %v198
    %460 = vmatpush1.msra.mxu0 %v197
    %461 = vmatprep.subr.mxu0 %v196
    %462 = vmatpush1.msra.mxu0 %v195
    %463 = vmatprep.subr.mxu0 %v194
    %464 = vmatpush1.msra.mxu0 %v193
    %465 = vmatprep.subr.mxu0 %v192
    %466 = vmatpush1.msra.mxu0 %v191
    %467 = vmatprep.subr.mxu0 %v190
    %468 = vmatpush1.msra.mxu0 %v189
    %469 = vmatprep.subr.mxu0 %v188
    %470 = vmatpush1.msra.mxu0 %v187
    %471 = vmatprep.subr.mxu0 %v186
    %472 = vmatpush1.msra.mxu0 %v185
    %473 = vmatprep.subr.mxu0 %v184
    %474 = vmatpush1.msra.mxu0 %v183
    %475 = vmatprep.subr.mxu0 %v182
    %476 = vmatpush1.msra.mxu0 %v181
    %477 = vmatprep.subr.mxu0 %v180
    %478 = vmatpush1.msra.mxu0 %v179
    %479 = vmatprep.subr.mxu0 %v178
    %480 = vmatpush1.msra.mxu0 %v177
    %481 = vmatprep.subr.mxu0 %v176
    %482 = vmatpush1.msra.mxu0 %v175
    %483 = vmatprep.subr.mxu0 %v174
    %484 = vmatpush1.msra.mxu0 %v173
    %485 = vmatprep.subr.mxu0 %v172
    %486 = vmatpush1.msra.mxu0 %v171
    %487 = vmatprep.subr.mxu0 %v234
    %488 = vmatpush2.msra.mxu0 %v233
    %489 = vmatprep.subr.mxu0 %v232
    %490 = vmatpush2.msra.mxu0 %v231
    %491 = vmatprep.subr.mxu0 %v230
    %492 = vmatpush2.msra.mxu0 %v229
    %493 = vmatprep.subr.mxu0 %v228
    %494 = vmatpush2.msra.mxu0 %v227
    %495 = vmatprep.subr.mxu0 %v226
    %496 = vmatpush2.msra.mxu0 %v225
    %497 = vmatprep.subr.mxu0 %v224
    %498 = vmatpush2.msra.mxu0 %v223
    %499 = vmatprep.subr.mxu0 %v222
    %500 = vmatpush2.msra.mxu0 %v221
    %501 = vmatprep.subr.mxu0 %v220
    %502 = vmatpush2.msra.mxu0 %v219
    %503 = vmatprep.subr.mxu0 %v218
    %504 = vmatpush2.msra.mxu0 %v217
    %505 = vmatprep.subr.mxu0 %v216
    %506 = vmatpush2.msra.mxu0 %v215
    %507 = vmatprep.subr.mxu0 %v214
    %508 = vmatpush2.msra.mxu0 %v213
    %509 = vmatprep.subr.mxu0 %v212
    %510 = vmatpush2.msra.mxu0 %v211
    %511 = vmatprep.subr.mxu0 %v210
    %512 = vmatpush2.msra.mxu0 %v209
    %513 = vmatprep.subr.mxu0 %v208
    %514 = vmatpush2.msra.mxu0 %v207
    %515 = vmatprep.subr.mxu0 %v206
    %516 = vmatpush2.msra.mxu0 %v205
    %517 = vmatprep.subr.mxu0 %v204
    %518 = vmatpush2.msra.mxu0 %v203
    %519 = vmatprep.mubr.f32.mxu0 %v102
    %520 = vmatmul.mubr.f32.gmra.mxu0 %v101
    %v521 = vpop.f32.mrf.mxu0
    %v522 = vadd.f32 %v451, %v521
    %v523 = vpop.f32.mrf.mxu0
    %v524 = vadd.f32 %v453, %v523
    %525 = vdwg.mxu0
    %526 = vmatprep.subr.mxu0 %v266
    %527 = vmatpush1.msra.mxu0 %v265
    %528 = vmatprep.subr.mxu0 %v264
    %529 = vmatpush1.msra.mxu0 %v263
    %530 = vmatprep.subr.mxu0 %v262
    %531 = vmatpush1.msra.mxu0 %v261
    %532 = vmatprep.subr.mxu0 %v260
    %533 = vmatpush1.msra.mxu0 %v259
    %534 = vmatprep.subr.mxu0 %v258
    %535 = vmatpush1.msra.mxu0 %v257
    %536 = vmatprep.subr.mxu0 %v256
    %537 = vmatpush1.msra.mxu0 %v255
    %538 = vmatprep.subr.mxu0 %v254
    %539 = vmatpush1.msra.mxu0 %v253
    %540 = vmatprep.subr.mxu0 %v252
    %541 = vmatpush1.msra.mxu0 %v251
    %542 = vmatprep.subr.mxu0 %v250
    %543 = vmatpush1.msra.mxu0 %v249
    %544 = vmatprep.subr.mxu0 %v248
    %545 = vmatpush1.msra.mxu0 %v247
    %546 = vmatprep.subr.mxu0 %v246
    %547 = vmatpush1.msra.mxu0 %v245
    %548 = vmatprep.subr.mxu0 %v244
    %549 = vmatpush1.msra.mxu0 %v243
    %550 = vmatprep.subr.mxu0 %v242
    %551 = vmatpush1.msra.mxu0 %v241
    %552 = vmatprep.subr.mxu0 %v240
    %553 = vmatpush1.msra.mxu0 %v239
    %554 = vmatprep.subr.mxu0 %v238
    %555 = vmatpush1.msra.mxu0 %v237
    %556 = vmatprep.subr.mxu0 %v236
    %557 = vmatpush1.msra.mxu0 %v235
    %558 = vmatprep.subr.mxu0 %v298
    %559 = vmatpush2.msra.mxu0 %v297
    %560 = vmatprep.subr.mxu0 %v296
    %561 = vmatpush2.msra.mxu0 %v295
    %562 = vmatprep.subr.mxu0 %v294
    %563 = vmatpush2.msra.mxu0 %v293
    %564 = vmatprep.subr.mxu0 %v292
    %565 = vmatpush2.msra.mxu0 %v291
    %566 = vmatprep.subr.mxu0 %v290
    %567 = vmatpush2.msra.mxu0 %v289
    %568 = vmatprep.subr.mxu0 %v288
    %569 = vmatpush2.msra.mxu0 %v287
    %570 = vmatprep.subr.mxu0 %v286
    %571 = vmatpush2.msra.mxu0 %v285
    %572 = vmatprep.subr.mxu0 %v284
    %573 = vmatpush2.msra.mxu0 %v283
    %574 = vmatprep.subr.mxu0 %v282
    %575 = vmatpush2.msra.mxu0 %v281
    %576 = vmatprep.subr.mxu0 %v280
    %577 = vmatpush2.msra.mxu0 %v279
    %578 = vmatprep.subr.mxu0 %v278
    %579 = vmatpush2.msra.mxu0 %v277
    %580 = vmatprep.subr.mxu0 %v276
    %581 = vmatpush2.msra.mxu0 %v275
    %582 = vmatprep.subr.mxu0 %v274
    %583 = vmatpush2.msra.mxu0 %v273
    %584 = vmatprep.subr.mxu0 %v272
    %585 = vmatpush2.msra.mxu0 %v271
    %586 = vmatprep.subr.mxu0 %v270
    %587 = vmatpush2.msra.mxu0 %v269
    %588 = vmatprep.subr.mxu0 %v268
    %589 = vmatpush2.msra.mxu0 %v267
    %590 = vmatprep.mubr.f32.mxu0 %v104
    %591 = vmatmul.mubr.f32.gmra.mxu0 %v103
    %v592 = vpop.f32.mrf.mxu0
    %v593 = vadd.f32 %v522, %v592
    %v594 = vpop.f32.mrf.mxu0
    %v595 = vadd.f32 %v524, %v594
    %596 = vdwg.mxu0
    %597 = vmatprep.subr.mxu0 %v330
    %598 = vmatpush1.msra.mxu0 %v329
    %599 = vmatprep.subr.mxu0 %v328
    %600 = vmatpush1.msra.mxu0 %v327
    %601 = vmatprep.subr.mxu0 %v326
    %602 = vmatpush1.msra.mxu0 %v325
    %603 = vmatprep.subr.mxu0 %v324
    %604 = vmatpush1.msra.mxu0 %v323
    %605 = vmatprep.subr.mxu0 %v322
    %606 = vmatpush1.msra.mxu0 %v321
    %607 = vmatprep.subr.mxu0 %v320
    %608 = vmatpush1.msra.mxu0 %v319
    %609 = vmatprep.subr.mxu0 %v318
    %610 = vmatpush1.msra.mxu0 %v317
    %611 = vmatprep.subr.mxu0 %v316
    %612 = vmatpush1.msra.mxu0 %v315
    %613 = vmatprep.subr.mxu0 %v314
    %614 = vmatpush1.msra.mxu0 %v313
    %615 = vmatprep.subr.mxu0 %v312
    %616 = vmatpush1.msra.mxu0 %v311
    %617 = vmatprep.subr.mxu0 %v310
    %618 = vmatpush1.msra.mxu0 %v309
    %619 = vmatprep.subr.mxu0 %v308
    %620 = vmatpush1.msra.mxu0 %v307
    %621 = vmatprep.subr.mxu0 %v306
    %622 = vmatpush1.msra.mxu0 %v305
    %623 = vmatprep.subr.mxu0 %v304
    %624 = vmatpush1.msra.mxu0 %v303
    %625 = vmatprep.subr.mxu0 %v302
    %626 = vmatpush1.msra.mxu0 %v301
    %627 = vmatprep.subr.mxu0 %v300
    %628 = vmatpush1.msra.mxu0 %v299
    %629 = vmatprep.subr.mxu0 0.0
    %630 = vmatpush2.msra.mxu0 0.0
    %631 = vmatprep.subr.mxu0 %v382
    %632 = vmatpush2.msra.mxu0 %v379
    %633 = vmatprep.subr.mxu0 %v358
    %634 = vmatpush2.msra.mxu0 %v357
    %635 = vmatprep.subr.mxu0 %v356
    %636 = vmatpush2.msra.mxu0 %v355
    %637 = vmatprep.subr.mxu0 %v354
    %638 = vmatpush2.msra.mxu0 %v353
    %639 = vmatprep.subr.mxu0 %v352
    %640 = vmatpush2.msra.mxu0 %v351
    %641 = vmatprep.subr.mxu0 %v350
    %642 = vmatpush2.msra.mxu0 %v349
    %643 = vmatprep.subr.mxu0 %v348
    %644 = vmatpush2.msra.mxu0 %v347
    %645 = vmatprep.subr.mxu0 %v346
    %646 = vmatpush2.msra.mxu0 %v345
    %647 = vmatprep.subr.mxu0 %v344
    %648 = vmatpush2.msra.mxu0 %v343
    %649 = vmatprep.subr.mxu0 %v342
    %650 = vmatpush2.msra.mxu0 %v341
    %651 = vmatprep.subr.mxu0 %v340
    %652 = vmatpush2.msra.mxu0 %v339
    %653 = vmatprep.subr.mxu0 %v338
    %654 = vmatpush2.msra.mxu0 %v337
    %655 = vmatprep.subr.mxu0 %v336
    %656 = vmatpush2.msra.mxu0 %v335
    %657 = vmatprep.subr.mxu0 %v334
    %658 = vmatpush2.msra.mxu0 %v333
    %659 = vmatprep.subr.mxu0 %v332
    %660 = vmatpush2.msra.mxu0 %v331
    %661 = vmatprep.mubr.f32.mxu0 %v375
    %662 = vmatmul.mubr.f32.gmra.mxu0 %v105
    %v663 = vpop.f32.mrf.mxu0
    %v664 = vadd.f32 %v593, %v663
    %v665 = vpop.f32.mrf.mxu0
    %v666 = vadd.f32 %v595, %v665
    %667 = vdwg.mxu0
    %v668 = vmax.f32 %v664, 0.0
    %v669 = vmax.f32 %v666, 0.0
    %v670 = vld [vmem:[#allocation7] sm:$0xff]
    %v671 = vld [vmem:[#allocation7 + $0x8] sm:$0xff]
    %v672 = vld [vmem:[#allocation7 + $0x10] sm:$0xff]
    %v673 = vld [vmem:[#allocation7 + $0x18] sm:$0xff]
    %v674 = vld [vmem:[#allocation7 + $0x20] sm:$0xff]
    %v675 = vld [vmem:[#allocation7 + $0x28] sm:$0xff]
    %v676 = vld [vmem:[#allocation7 + $0x30] sm:$0xff]
    %v677 = vld [vmem:[#allocation7 + $0x38] sm:$0xff]
    %v678 = vld [vmem:[#allocation7 + $0x40] sm:$0xff]
    %v679 = vld [vmem:[#allocation7 + $0x48] sm:$0xff]
    %v680 = vld [vmem:[#allocation7 + $0x50] sm:$0xff]
    %v681 = vld [vmem:[#allocation7 + $0x58] sm:$0xff]
    %v682 = vld [vmem:[#allocation7 + $0x60] sm:$0xff]
    %v683 = vld [vmem:[#allocation7 + $0x68] sm:$0xff]
    %v684 = vld [vmem:[#allocation7 + $0x70] sm:$0xff]
    %v685 = vld [vmem:[#allocation7 + $0x78] sm:$0xff]
    %v686 = vld [vmem:[#allocation7 + $0x80] sm:$0xff]
    %v687 = vld [vmem:[#allocation7 + $0x88] sm:$0xff]
    %v688 = vld [vmem:[#allocation7 + $0x90] sm:$0xff]
    %v689 = vld [vmem:[#allocation7 + $0x98] sm:$0xff]
    %v690 = vld [vmem:[#allocation7 + $0xa0] sm:$0xff]
    %v691 = vld [vmem:[#allocation7 + $0xa8] sm:$0xff]
    %v692 = vld [vmem:[#allocation7 + $0xb0] sm:$0xff]
    %v693 = vld [vmem:[#allocation7 + $0xb8] sm:$0xff]
    %v694 = vld [vmem:[#allocation7 + $0xc0] sm:$0xff]
    %v695 = vld [vmem:[#allocation7 + $0xc8] sm:$0xff]
    %v696 = vld [vmem:[#allocation7 + $0xd0] sm:$0xff]
    %v697 = vld [vmem:[#allocation7 + $0xd8] sm:$0xff]
    %v698 = vld [vmem:[#allocation7 + $0xe0] sm:$0xff]
    %v699 = vld [vmem:[#allocation7 + $0xe8] sm:$0xff]
    %v700 = vld [vmem:[#allocation7 + $0xf0] sm:$0xff]
    %v701 = vld [vmem:[#allocation7 + $0xf8] sm:$0xff]
    %v702 = vld [vmem:[%s4] sm:$0x1]
    %v704 = vlaneseq
    %v705 = vshrl.u32 %v704, 7
    %v706 = vsub.s32 0, %v705
    %v707 = vrot.slane %v702, %v706
    %709 = vmatprep.subr.mxu0 0.0
    %710 = vmatpush1.msra.mxu0 %v685
    %711 = vmatprep.subr.mxu0 0.0
    %712 = vmatpush1.msra.mxu0 %v684
    %713 = vmatprep.subr.mxu0 0.0
    %714 = vmatpush1.msra.mxu0 %v683
    %715 = vmatprep.subr.mxu0 0.0
    %716 = vmatpush1.msra.mxu0 %v682
    %717 = vmatprep.subr.mxu0 0.0
    %718 = vmatpush1.msra.mxu0 %v681
    %719 = vmatprep.subr.mxu0 0.0
    %720 = vmatpush1.msra.mxu0 %v680
    %721 = vmatprep.subr.mxu0 0.0
    %722 = vmatpush1.msra.mxu0 %v679
    %723 = vmatprep.subr.mxu0 0.0
    %724 = vmatpush1.msra.mxu0 %v678
    %725 = vmatprep.subr.mxu0 0.0
    %726 = vmatpush1.msra.mxu0 %v677
    %727 = vmatprep.subr.mxu0 0.0
    %728 = vmatpush1.msra.mxu0 %v676
    %729 = vmatprep.subr.mxu0 0.0
    %730 = vmatpush1.msra.mxu0 %v675
    %731 = vmatprep.subr.mxu0 0.0
    %732 = vmatpush1.msra.mxu0 %v674
    %733 = vmatprep.subr.mxu0 0.0
    %734 = vmatpush1.msra.mxu0 %v673
    %735 = vmatprep.subr.mxu0 0.0
    %736 = vmatpush1.msra.mxu0 %v672
    %737 = vmatprep.subr.mxu0 0.0
    %738 = vmatpush1.msra.mxu0 %v671
    %739 = vmatprep.subr.mxu0 0.0
    %740 = vmatpush1.msra.mxu0 %v670
    %741 = vmatprep.subr.mxu0 0.0
    %742 = vmatpush2.msra.mxu0 %v701
    %743 = vmatprep.subr.mxu0 0.0
    %744 = vmatpush2.msra.mxu0 %v700
    %745 = vmatprep.subr.mxu0 0.0
    %746 = vmatpush2.msra.mxu0 %v699
    %747 = vmatprep.subr.mxu0 0.0
    %748 = vmatpush2.msra.mxu0 %v698
    %749 = vmatprep.subr.mxu0 0.0
    %750 = vmatpush2.msra.mxu0 %v697
    %751 = vmatprep.subr.mxu0 0.0
    %752 = vmatpush2.msra.mxu0 %v696
    %753 = vmatprep.subr.mxu0 0.0
    %754 = vmatpush2.msra.mxu0 %v695
    %755 = vmatprep.subr.mxu0 0.0
    %756 = vmatpush2.msra.mxu0 %v694
    %757 = vmatprep.subr.mxu0 0.0
    %758 = vmatpush2.msra.mxu0 %v693
    %759 = vmatprep.subr.mxu0 0.0
    %760 = vmatpush2.msra.mxu0 %v692
    %761 = vmatprep.subr.mxu0 0.0
    %762 = vmatpush2.msra.mxu0 %v691
    %763 = vmatprep.subr.mxu0 0.0
    %764 = vmatpush2.msra.mxu0 %v690
    %765 = vmatprep.subr.mxu0 0.0
    %766 = vmatpush2.msra.mxu0 %v689
    %767 = vmatprep.subr.mxu0 0.0
    %768 = vmatpush2.msra.mxu0 %v688
    %769 = vmatprep.subr.mxu0 0.0
    %770 = vmatpush2.msra.mxu0 %v687
    %771 = vmatprep.subr.mxu0 0.0
    %772 = vmatpush2.msra.mxu0 %v686
    %773 = vmatprep.mubr.f32.mxu0 %v669
    %774 = vmatmul.mubr.f32.gmra.mxu0 %v668
    %v775 = vpop.f32.mrf.mxu0
    %v776 = vadd.f32 %v707, %v775
    %v777 = vpop.f32.mrf.mxu0
    %778 = vdwg.mxu0
    %v779 = vmax.f32 %v776, 0.0
    %v780 = vld [vmem:[#allocation8] sm:$0xff]
    %v781 = vld [vmem:[#allocation8 + $0x8] sm:$0xff]
    %v782 = vld [vmem:[#allocation8 + $0x10] sm:$0xff]
    %v783 = vld [vmem:[#allocation8 + $0x18] sm:$0xff]
    %v784 = vld [vmem:[#allocation8 + $0x20] sm:$0xff]
    %v785 = vld [vmem:[#allocation8 + $0x28] sm:$0xff]
    %v786 = vld [vmem:[#allocation8 + $0x30] sm:$0xff]
    %v787 = vld [vmem:[#allocation8 + $0x38] sm:$0xff]
    %v788 = vld [vmem:[#allocation8 + $0x40] sm:$0xff]
    %v789 = vld [vmem:[#allocation8 + $0x48] sm:$0xff]
    %v790 = vld [vmem:[#allocation8 + $0x50] sm:$0xff]
    %v791 = vld [vmem:[#allocation8 + $0x58] sm:$0xff]
    %v792 = vld [vmem:[#allocation8 + $0x60] sm:$0xff]
    %v793 = vld [vmem:[#allocation8 + $0x68] sm:$0xff]
    %v794 = vld [vmem:[#allocation8 + $0x70] sm:$0xff]
    %v795 = vld [vmem:[#allocation8 + $0x78] sm:$0xff]
    %v796 = vld [vmem:[%s6] sm:$0x1]
    %v798 = vlaneseq
    %v799 = vshrl.u32 %v798, 7
    %v800 = vsub.s32 0, %v799
    %v801 = vrot.slane %v796, %v800
    %803 = vmatprep.subr.mxu0 0.0
    %804 = vmatpush1.msra.mxu0 %v795
    %805 = vmatprep.subr.mxu0 0.0
    %806 = vmatpush1.msra.mxu0 %v794
    %807 = vmatprep.subr.mxu0 0.0
    %808 = vmatpush1.msra.mxu0 %v793
    %809 = vmatprep.subr.mxu0 0.0
    %810 = vmatpush1.msra.mxu0 %v792
    %811 = vmatprep.subr.mxu0 0.0
    %812 = vmatpush1.msra.mxu0 %v791
    %813 = vmatprep.subr.mxu0 0.0
    %814 = vmatpush1.msra.mxu0 %v790
    %815 = vmatprep.subr.mxu0 0.0
    %816 = vmatpush1.msra.mxu0 %v789
    %817 = vmatprep.subr.mxu0 0.0
    %818 = vmatpush1.msra.mxu0 %v788
    %819 = vmatprep.subr.mxu0 0.0
    %820 = vmatpush1.msra.mxu0 %v787
    %821 = vmatprep.subr.mxu0 0.0
    %822 = vmatpush1.msra.mxu0 %v786
    %823 = vmatprep.subr.mxu0 0.0
    %824 = vmatpush1.msra.mxu0 %v785
    %825 = vmatprep.subr.mxu0 0.0
    %826 = vmatpush1.msra.mxu0 %v784
    %827 = vmatprep.subr.mxu0 0.0
    %828 = vmatpush1.msra.mxu0 %v783
    %829 = vmatprep.subr.mxu0 0.0
    %830 = vmatpush1.msra.mxu0 %v782
    %831 = vmatprep.subr.mxu0 0.0
    %832 = vmatpush1.msra.mxu0 %v781
    %833 = vmatprep.subr.mxu0 0.0
    %834 = vmatpush1.msra.mxu0 %v780
    %835 = vmatprep.subr.mxu0 0.0
    %836 = vmatpush2.msra.mxu0 0.0
    %837 = vmatprep.subr.mxu0 0.0
    %838 = vmatpush2.msra.mxu0 0.0
    %839 = vmatprep.subr.mxu0 0.0
    %840 = vmatpush2.msra.mxu0 0.0
    %841 = vmatprep.subr.mxu0 0.0
    %842 = vmatpush2.msra.mxu0 0.0
    %843 = vmatprep.subr.mxu0 0.0
    %844 = vmatpush2.msra.mxu0 0.0
    %845 = vmatprep.subr.mxu0 0.0
    %846 = vmatpush2.msra.mxu0 0.0
    %847 = vmatprep.subr.mxu0 0.0
    %848 = vmatpush2.msra.mxu0 0.0
    %849 = vmatprep.subr.mxu0 0.0
    %850 = vmatpush2.msra.mxu0 0.0
    %851 = vmatprep.subr.mxu0 0.0
    %852 = vmatpush2.msra.mxu0 0.0
    %853 = vmatprep.subr.mxu0 0.0
    %854 = vmatpush2.msra.mxu0 0.0
    %855 = vmatprep.subr.mxu0 0.0
    %856 = vmatpush2.msra.mxu0 0.0
    %857 = vmatprep.subr.mxu0 0.0
    %858 = vmatpush2.msra.mxu0 0.0
    %859 = vmatprep.subr.mxu0 0.0
    %860 = vmatpush2.msra.mxu0 0.0
    %861 = vmatprep.subr.mxu0 0.0
    %862 = vmatpush2.msra.mxu0 0.0
    %863 = vmatprep.subr.mxu0 0.0
    %864 = vmatpush2.msra.mxu0 0.0
    %865 = vmatprep.subr.mxu0 0.0
    %866 = vmatpush2.msra.mxu0 0.0
    %867 = vmatprep.mubr.f32.mxu0 0.0
    %868 = vmatmul.mubr.f32.gmra.mxu0 %v779
    %v869 = vpop.f32.mrf.mxu0
    %v870 = vadd.f32 %v801, %v869
    %v871 = vpop.f32.mrf.mxu0
    %872 = vdwg.mxu0
    %v873 = vmax.f32 %v870, 0.0
    %v874 = vld [vmem:[#allocation10] sm:$0xff]
    %v875 = vld [vmem:[#allocation10 + $0x8] sm:$0xff]
    %v876 = vld [vmem:[#allocation10 + $0x10] sm:$0xff]
    %v877 = vld [vmem:[#allocation10 + $0x18] sm:$0xff]
    %v878 = vld [vmem:[#allocation10 + $0x20] sm:$0xff]
    %v879 = vld [vmem:[#allocation10 + $0x28] sm:$0xff]
    %v880 = vld [vmem:[#allocation10 + $0x30] sm:$0xff]
    %v881 = vld [vmem:[#allocation10 + $0x38] sm:$0xff]
    %v882 = vld [vmem:[#allocation10 + $0x40] sm:$0xff]
    %v883 = vld [vmem:[#allocation10 + $0x48] sm:$0xff]
    %v884 = vld [vmem:[#allocation10 + $0x50] sm:$0xff]
    %v885 = vld [vmem:[#allocation10 + $0x58] sm:$0xff]
    %v886 = vld [vmem:[#allocation10 + $0x60] sm:$0xff]
    %v887 = vld [vmem:[#allocation10 + $0x68] sm:$0xff]
    %v888 = vld [vmem:[#allocation10 + $0x70] sm:$0xff]
    %v889 = vld [vmem:[#allocation10 + $0x78] sm:$0xff]
    %v890 = vld [vmem:[%s8] sm:$0x1]
    %v892 = vlaneseq
    %v893 = vshrl.u32 %v892, 7
    %v894 = vsub.s32 0, %v893
    %v895 = vrot.slane %v890, %v894
    %897 = vmatprep.subr.mxu0 0.0
    %898 = vmatpush1.msra.mxu0 %v889
    %899 = vmatprep.subr.mxu0 0.0
    %900 = vmatpush1.msra.mxu0 %v888
    %901 = vmatprep.subr.mxu0 0.0
    %902 = vmatpush1.msra.mxu0 %v887
    %903 = vmatprep.subr.mxu0 0.0
    %904 = vmatpush1.msra.mxu0 %v886
    %905 = vmatprep.subr.mxu0 0.0
    %906 = vmatpush1.msra.mxu0 %v885
    %907 = vmatprep.subr.mxu0 0.0
    %908 = vmatpush1.msra.mxu0 %v884
    %909 = vmatprep.subr.mxu0 0.0
    %910 = vmatpush1.msra.mxu0 %v883
    %911 = vmatprep.subr.mxu0 0.0
    %912 = vmatpush1.msra.mxu0 %v882
    %913 = vmatprep.subr.mxu0 0.0
    %914 = vmatpush1.msra.mxu0 %v881
    %915 = vmatprep.subr.mxu0 0.0
    %916 = vmatpush1.msra.mxu0 %v880
    %917 = vmatprep.subr.mxu0 0.0
    %918 = vmatpush1.msra.mxu0 %v879
    %919 = vmatprep.subr.mxu0 0.0
    %920 = vmatpush1.msra.mxu0 %v878
    %921 = vmatprep.subr.mxu0 0.0
    %922 = vmatpush1.msra.mxu0 %v877
    %923 = vmatprep.subr.mxu0 0.0
    %924 = vmatpush1.msra.mxu0 %v876
    %925 = vmatprep.subr.mxu0 0.0
    %926 = vmatpush1.msra.mxu0 %v875
    %927 = vmatprep.subr.mxu0 0.0
    %928 = vmatpush1.msra.mxu0 %v874
    %929 = vmatprep.subr.mxu0 0.0
    %930 = vmatpush2.msra.mxu0 0.0
    %931 = vmatprep.subr.mxu0 0.0
    %932 = vmatpush2.msra.mxu0 0.0
    %933 = vmatprep.subr.mxu0 0.0
    %934 = vmatpush2.msra.mxu0 0.0
    %935 = vmatprep.subr.mxu0 0.0
    %936 = vmatpush2.msra.mxu0 0.0
    %937 = vmatprep.subr.mxu0 0.0
    %938 = vmatpush2.msra.mxu0 0.0
    %939 = vmatprep.subr.mxu0 0.0
    %940 = vmatpush2.msra.mxu0 0.0
    %941 = vmatprep.subr.mxu0 0.0
    %942 = vmatpush2.msra.mxu0 0.0
    %943 = vmatprep.subr.mxu0 0.0
    %944 = vmatpush2.msra.mxu0 0.0
    %945 = vmatprep.subr.mxu0 0.0
    %946 = vmatpush2.msra.mxu0 0.0
    %947 = vmatprep.subr.mxu0 0.0
    %948 = vmatpush2.msra.mxu0 0.0
    %949 = vmatprep.subr.mxu0 0.0
    %950 = vmatpush2.msra.mxu0 0.0
    %951 = vmatprep.subr.mxu0 0.0
    %952 = vmatpush2.msra.mxu0 0.0
    %953 = vmatprep.subr.mxu0 0.0
    %954 = vmatpush2.msra.mxu0 0.0
    %955 = vmatprep.subr.mxu0 0.0
    %956 = vmatpush2.msra.mxu0 0.0
    %957 = vmatprep.subr.mxu0 0.0
    %958 = vmatpush2.msra.mxu0 0.0
    %959 = vmatprep.subr.mxu0 0.0
    %960 = vmatpush2.msra.mxu0 0.0
    %961 = vmatprep.mubr.f32.mxu0 0.0
    %962 = vmatmul.mubr.f32.gmra.mxu0 %v873
    %v963 = vpop.f32.mrf.mxu0
    %v964 = vadd.f32 %v895, %v963
    %v965 = vpop.f32.mrf.mxu0
    %966 = vdwg.mxu0
    %967 = vst [vmem:[#allocation11] sm:$0xff] %v964
    // Predicated region
    $region58: #{tpu_custom_call.1} parent=1 // pred_check
      _
    $region59: #{tpu_custom_call.1} parent=1 // pred_check_branch
      %969 = sbr.rel (0) target = $region61
    $region60: #{tpu_custom_call.1} parent=1 // pred_region
      %s971 = ssub.s32 128, 128
      %972 = vsyncadd [#allocation4], %s971
      %s974 = sshll.u32 [#allocation11], 4
      %s975 = int_to_ptr.vmem [resolvable:$true] %s974
      %977 = dma.vmem_to_hbm [thread:$0]  %s975, 128, %s9, [#allocation4]
    $region61: #{tpu_custom_call.1} parent=1 // pred_fallthru
      _
    // Predicated region
    $region62: #{tpu_custom_call.1} parent=1 // pred_check
      _
    $region63: #{tpu_custom_call.1} parent=1 // pred_check_branch
      %979 = sbr.rel (0) target = $region65
    $region64: #{tpu_custom_call.1} parent=1 // pred_region
      %980 = dma.done [#allocation4], 128
    $region65: #{tpu_custom_call.1} parent=1 // pred_fallthru
      _
    %981 = vsyncpa [#allocation3], 1
    %982 = vsyncpa [#allocation6], 1
    %983 = vsyncpa [#allocation9], 1
    %984 = vsyncpa [#allocation4], 1

</llo_original>
